<compile_context>
chip_gen: v5e
topology: v5e:2x2
jax: 0.10.0
libtpu: 0.0.40
codegen_flags: <defaults>
</compile_context>

<pallas_src>
import functools

import jax
import jax.numpy as jnp
from jax import lax
from jax.experimental import pallas as pl
from jax.experimental.pallas import tpu as pltpu


def cnn_block_kernel(x_ref, w_ref, shift_ref, o_ref, patch_ref, *,
                     row_stride, cout, batch, pv):
    # x_ref:     (B, 4*Cin, P2+1) bf16  space-to-depth input, channels-first, flattened spatial
    # w_ref:     (4*Cout, 16*Cin) bf16  conv weights (BN scale folded), one row group per pool offset
    # shift_ref: (Cout, 1)        f32   folded BN shift (incl. conv bias)
    # o_ref:     (1, Cout, B*Pv)  bf16  pooled output, B images side by side on the lane axis
    # patch_ref: (16*Cin, B*Pv)   bf16  persistent VMEM im2col scratch
    r = row_stride

    # Build the im2col slab for every image of the block (static unroll over B).
    # Image b occupies the lane band [b*Pv, (b+1)*Pv).
    for b in range(batch):
        xb = x_ref[b]                                          # (4*Cin, P2+1) bf16
        patch_ref[:, b * pv:(b + 1) * pv] = jnp.concatenate(
            [xb[:, 0:pv],
             xb[:, 1:pv + 1],
             xb[:, r:r + pv],
             xb[:, r + 1:r + 1 + pv]],
            axis=0)                                            # (16*Cin, Pv)

    # Single MXU matmul covering all 9 conv taps, 4 pooling offsets and B images.
    acc = jnp.dot(w_ref[...], patch_ref[...],
                  preferred_element_type=jnp.float32)          # (4*Cout, B*Pv) f32

    # 2x2 max-pool = max over the 4 pooling-offset row groups (leading-axis max, pure VPU).
    m = jnp.max(acc.reshape(4, cout, batch * pv), axis=0)      # (Cout, B*Pv) f32

    # BatchNorm shift (incl. conv bias) + ReLU; both commute with the max above.
    o_ref[0] = jnp.maximum(m + shift_ref[...], 0.0).astype(o_ref.dtype)


def cnn_block_forward(x_nchw, w_hwio, conv_bias, gamma, beta, run_mean, run_var,
                      eps=1e-5, lane_target=512):
    # Eval-mode BatchNorm only (running statistics folded into the conv weights).
    N, Cin, H, W = x_nchw.shape
    KH, KW, _, Cout = w_hwio.shape
    assert (KH, KW) == (3, 3) and H % 2 == 0 and W % 2 == 0
    Hout, Wout = H // 2, W // 2
    Hb, Wb = Hout + 1, Wout + 1       # space-to-depth grid of the padded input
    R = Wb                            # flattened row stride in s2d space
    P2 = Hb * Wb
    Pv = Hout * Wb                    # positions computed per image (dummy column dropped later)

    # Images per grid step: make the matmul/store lane dim B*Pv >= lane_target where N allows.
    # (At production N, prefer B giving G = ceil(N/B) >= 2 so both v7x TensorCores get work.)
    B = max(1, min(N, -(-lane_target // Pv)))
    G = -(-N // B)
    Npad = G * B

    # ---- input layout glue (bijective, no tap duplication): cast to bf16 FIRST so the
    #      pad -> space-to-depth -> channels-first relayout moves half the bytes, then flatten
    #      spatial (+1 tail elem so every in-kernel shifted slice stays in bounds).
    xb16 = x_nchw.astype(jnp.bfloat16)
    xp = jnp.pad(xb16, ((0, 0), (0, 0), (1, 1), (1, 1)))                  # (N, Cin, H+2, W+2)
    xs = xp.reshape(N, Cin, Hb, 2, Wb, 2)
    xs = jnp.transpose(xs, (0, 3, 5, 1, 2, 4))                            # (N, p, q, Cin, Hb, Wb)
    xs = xs.reshape(N, 4 * Cin, P2)
    xs = jnp.pad(xs, ((0, 0), (0, 0), (0, 1)))                            # (N, 4*Cin, P2+1)
    if Npad != N:
        xs = jnp.pad(xs, ((0, Npad - N), (0, 0), (0, 0)))                 # batch pad to G*B

    # ---- weights: fold BN scale, scatter the 3x3 taps into the s2d 2x2-window layout,
    #      one row group per pooling offset.  Result: (4*Cout, 16*Cin) bf16.
    bn_scale = (gamma / jnp.sqrt(run_var + eps)).astype(jnp.float32)      # (Cout,)
    wf = w_hwio.astype(jnp.float32) * bn_scale                            # (3,3,Cin,Cout)
    zero = jnp.zeros((Cin, Cout), jnp.float32)
    rows = []
    for dh in range(2):               # s2d window row shift
        for dw in range(2):           # s2d window col shift
            for p in range(2):        # intra-block row
                for q in range(2):    # intra-block col
                    t, s = 2 * dh + p, 2 * dw + q        # tap position in the 4x4 footprint
                    cols = []
                    for a in range(2):        # pooling-offset row
                        for b in range(2):    # pooling-offset col
                            dy, dx = t - a, s - b
                            cols.append(wf[dy, dx]
                                        if (0 <= dy < 3 and 0 <= dx < 3) else zero)
                    rows.append(jnp.concatenate(cols, axis=1))            # (Cin, 4*Cout)
    w_all_t = jnp.concatenate(rows, axis=0).T.astype(jnp.bfloat16)        # (4*Cout, 16*Cin)

    # Folded BN shift (includes conv bias); broadcasts over lanes in-kernel.
    shift = (beta + (conv_bias - run_mean) * bn_scale).astype(jnp.float32).reshape(Cout, 1)

    kernel = functools.partial(cnn_block_kernel, row_stride=R, cout=Cout, batch=B, pv=Pv)
    out = pl.pallas_call(
        kernel,
        out_shape=jax.ShapeDtypeStruct((G, Cout, B * Pv), jnp.bfloat16),
        grid=(G,),
        in_specs=[
            pl.BlockSpec((B, 4 * Cin, P2 + 1), lambda g: (g, 0, 0)),
            pl.BlockSpec((4 * Cout, 16 * Cin), lambda g: (0, 0)),
            pl.BlockSpec((Cout, 1), lambda g: (0, 0)),
        ],
        out_specs=pl.BlockSpec((1, Cout, B * Pv), lambda g: (g, 0, 0)),
        scratch_shapes=[pltpu.VMEM((16 * Cin, B * Pv), jnp.bfloat16)],
        compiler_params=pltpu.CompilerParams(
            dimension_semantics=("parallel",)),
    )(xs, w_all_t, shift)

    # Un-pack the per-image lane bands and drop the dummy w'==Wout column (tied to R=Wb).
    out = out.reshape(G, Cout, B, Hout, Wb)
    out = jnp.transpose(out, (0, 2, 1, 3, 4)).reshape(Npad, Cout, Hout, Wb)
    return out[:N, :, :, :Wout]       # bf16 NCHW; cast at the consumer if f32 is required


if __name__ == "__main__":
    key = jax.random.PRNGKey(0)
    N, Cin, Cout, H, W = 2, 4, 8, 16, 16
    ks = jax.random.split(key, 7)

    x = jax.random.normal(ks[0], (N, Cin, H, W), jnp.float32)
    w_hwio = jax.random.normal(ks[1], (3, 3, Cin, Cout), jnp.float32) * 0.2
    conv_bias = jax.random.normal(ks[2], (Cout,), jnp.float32) * 0.1
    gamma = 1.0 + 0.1 * jax.random.normal(ks[3], (Cout,), jnp.float32)
    beta = 0.1 * jax.random.normal(ks[4], (Cout,), jnp.float32)
    run_mean = 0.1 * jax.random.normal(ks[5], (Cout,), jnp.float32)
    run_var = jnp.abs(1.0 + 0.1 * jax.random.normal(ks[6], (Cout,), jnp.float32))
    eps = 1e-5

    out = jax.block_until_ready(
        cnn_block_forward(x, w_hwio, conv_bias, gamma, beta, run_mean, run_var, eps))

    # Pure-JAX f32 reference (conv + BN(eval) + ReLU + maxpool), NCHW output.
    x_nhwc = jnp.transpose(x, (0, 2, 3, 1))
    y = lax.conv_general_dilated(x_nhwc, w_hwio, (1, 1), ((1, 1), (1, 1)),
                                 dimension_numbers=('NHWC', 'HWIO', 'NHWC')) + conv_bias
    y = (y - run_mean) / jnp.sqrt(run_var + eps) * gamma + beta
    y = jnp.maximum(y, 0.0)
    yp = lax.reduce_window(y, -jnp.inf, lax.max, (1, 2, 2, 1), (1, 2, 2, 1), 'VALID')
    ref = jnp.transpose(yp, (0, 3, 1, 2))

    assert out.shape == (N, Cout, H // 2, W // 2), out.shape
    # bf16 matmul inputs + bf16 output store (f32 accumulation) -> loose tolerance vs f32 ref.
    out_f32 = out.astype(jnp.float32)
    err = float(jnp.max(jnp.abs(out_f32 - ref)))
    assert jnp.allclose(out_f32, ref, atol=1e-1, rtol=5e-2), err
    print("KERNEL_OK")
</pallas_src>

<mosaic_0001>
module attributes {stable_mosaic.version = 11 : i64} {
  func.func @cnn_block_kernel(%arg0: i32, %arg1: memref<2x16x82xbf16, #tpu.memory_space<vmem>>, %arg2: memref<32x64xbf16, #tpu.memory_space<vmem>>, %arg3: memref<8x1xf32, #tpu.memory_space<vmem>>, %arg4: memref<1x8x144xbf16, #tpu.memory_space<vmem>>, %arg5: memref<64x144xbf16, #tpu.memory_space<vmem>>) attributes {dimension_semantics = [#tpu.dimension_semantics<parallel>], iteration_bounds = array<i64: 1>, scalar_prefetch = 0 : i64, scratch_operands = 1 : i64, tpu.core_type = #tpu.core_type<tc>, window_params = [{transform_indices = @transform_0, window_bounds = array<i64: 2, 16, 82>}, {pipeline_mode = #tpu.pipeline_mode<synchronous>, transform_indices = @transform_1, window_bounds = array<i64: 32, 64>}, {pipeline_mode = #tpu.pipeline_mode<synchronous>, transform_indices = @transform_2, window_bounds = array<i64: 8, 1>}, {transform_indices = @transform_3, window_bounds = array<i64: 1, 8, 144>}]} {
    %c0 = arith.constant 0 : index
    %c0_0 = arith.constant 0 : index
    %c0_1 = arith.constant 0 : index
    %0 = vector.load %arg1[%c0, %c0_0, %c0_1] : memref<2x16x82xbf16, #tpu.memory_space<vmem>>, vector<1x16x82xbf16>
    %1 = vector.shape_cast %0 : vector<1x16x82xbf16> to vector<16x82xbf16>
    %2 = vector.extract_strided_slice %1 {offsets = [0, 0], sizes = [16, 72], strides = [1, 1]} : vector<16x82xbf16> to vector<16x72xbf16>
    %3 = vector.extract_strided_slice %1 {offsets = [0, 1], sizes = [16, 72], strides = [1, 1]} : vector<16x82xbf16> to vector<16x72xbf16>
    %4 = vector.extract_strided_slice %1 {offsets = [0, 9], sizes = [16, 72], strides = [1, 1]} : vector<16x82xbf16> to vector<16x72xbf16>
    %5 = vector.extract_strided_slice %1 {offsets = [0, 10], sizes = [16, 72], strides = [1, 1]} : vector<16x82xbf16> to vector<16x72xbf16>
    %6 = tpu.concatenate %2, %3, %4, %5 in 0 : vector<16x72xbf16>, vector<16x72xbf16>, vector<16x72xbf16>, vector<16x72xbf16> -> vector<64x72xbf16>
    %c0_2 = arith.constant 0 : index
    %c0_3 = arith.constant 0 : index
    %7 = vector.load %arg5[%c0_2, %c0_3] : memref<64x144xbf16, #tpu.memory_space<vmem>>, vector<64x72xbf16>
    tpu.vector_store %arg5[%c0_2, %c0_3], %6 {strides = array<i32>} : memref<64x144xbf16, #tpu.memory_space<vmem>>, vector<64x72xbf16>,
    %c1 = arith.constant 1 : index
    %c0_4 = arith.constant 0 : index
    %c0_5 = arith.constant 0 : index
    %8 = vector.load %arg1[%c1, %c0_4, %c0_5] : memref<2x16x82xbf16, #tpu.memory_space<vmem>>, vector<1x16x82xbf16>
    %9 = vector.shape_cast %8 : vector<1x16x82xbf16> to vector<16x82xbf16>
    %10 = vector.extract_strided_slice %9 {offsets = [0, 0], sizes = [16, 72], strides = [1, 1]} : vector<16x82xbf16> to vector<16x72xbf16>
    %11 = vector.extract_strided_slice %9 {offsets = [0, 1], sizes = [16, 72], strides = [1, 1]} : vector<16x82xbf16> to vector<16x72xbf16>
    %12 = vector.extract_strided_slice %9 {offsets = [0, 9], sizes = [16, 72], strides = [1, 1]} : vector<16x82xbf16> to vector<16x72xbf16>
    %13 = vector.extract_strided_slice %9 {offsets = [0, 10], sizes = [16, 72], strides = [1, 1]} : vector<16x82xbf16> to vector<16x72xbf16>
    %14 = tpu.concatenate %10, %11, %12, %13 in 0 : vector<16x72xbf16>, vector<16x72xbf16>, vector<16x72xbf16>, vector<16x72xbf16> -> vector<64x72xbf16>
    %c0_6 = arith.constant 0 : index
    %c72 = arith.constant 72 : index
    %15 = vector.load %arg5[%c0_6, %c72] : memref<64x144xbf16, #tpu.memory_space<vmem>>, vector<64x72xbf16>
    tpu.vector_store %arg5[%c0_6, %c72], %14 {strides = array<i32>} : memref<64x144xbf16, #tpu.memory_space<vmem>>, vector<64x72xbf16>,
    %c0_7 = arith.constant 0 : index
    %c0_8 = arith.constant 0 : index
    %16 = vector.load %arg2[%c0_7, %c0_8] : memref<32x64xbf16, #tpu.memory_space<vmem>>, vector<32x64xbf16>
    %c0_9 = arith.constant 0 : index
    %c0_10 = arith.constant 0 : index
    %17 = vector.load %arg5[%c0_9, %c0_10] : memref<64x144xbf16, #tpu.memory_space<vmem>>, vector<64x144xbf16>
    %cst = arith.constant dense<0.000000e+00> : vector<32x144xf32>
    %18 = tpu.matmul %16, %17, %cst {dimension_numbers = #tpu.dot_dimension_numbers<[1], [0], [0], [1], [0, 0, 1, 1], [], []>} : vector<32x64xbf16>, vector<64x144xbf16>, vector<32x144xf32> -> vector<32x144xf32>
    %19 = vector.shape_cast %18 : vector<32x144xf32> to vector<4x8x144xf32>
    %cst_11 = arith.constant dense<0xFF800000> : vector<8x144xf32>
    %20 = vector.multi_reduction <maximumf>, %19, %cst_11 [0] : vector<4x8x144xf32> to vector<8x144xf32>
    %c0_12 = arith.constant 0 : index
    %c0_13 = arith.constant 0 : index
    %21 = vector.load %arg3[%c0_12, %c0_13] : memref<8x1xf32, #tpu.memory_space<vmem>>, vector<8x1xf32>
    %22 = vector.broadcast %21 : vector<8x1xf32> to vector<8x144xf32>
    %23 = arith.addf %20, %22 : vector<8x144xf32>
    %cst_14 = arith.constant 0.000000e+00 : f32
    %24 = vector.broadcast %cst_14 : f32 to vector<8x144xf32>
    %25 = arith.maximumf %23, %24 : vector<8x144xf32>
    %26 = arith.truncf %25 : vector<8x144xf32> to vector<8x144xbf16>
    %c0_15 = arith.constant 0 : index
    %c0_16 = arith.constant 0 : index
    %c0_17 = arith.constant 0 : index
    %27 = vector.load %arg4[%c0_15, %c0_16, %c0_17] : memref<1x8x144xbf16, #tpu.memory_space<vmem>>, vector<1x8x144xbf16>
    %28 = vector.shape_cast %27 : vector<1x8x144xbf16> to vector<8x144xbf16>
    %29 = vector.shape_cast %26 : vector<8x144xbf16> to vector<1x8x144xbf16>
    tpu.vector_store %arg4[%c0_15, %c0_16, %c0_17], %29 {strides = array<i32>} : memref<1x8x144xbf16, #tpu.memory_space<vmem>>, vector<1x8x144xbf16>,
    return
  }
  func.func @transform_0(%arg0: i32) -> (i32, i32, i32) {
    %c0_i32 = arith.constant 0 : i32
    %c0_i32_0 = arith.constant 0 : i32
    %c0_i32_1 = arith.constant 0 : i32
    return %arg0, %c0_i32, %c0_i32_0 : i32, i32, i32
  }
  func.func @transform_1(%arg0: i32) -> (i32, i32) {
    %c0_i32 = arith.constant 0 : i32
    %c0_i32_0 = arith.constant 0 : i32
    %c0_i32_1 = arith.constant 0 : i32
    return %c0_i32, %c0_i32_0 : i32, i32
  }
  func.func @transform_2(%arg0: i32) -> (i32, i32) {
    %c0_i32 = arith.constant 0 : i32
    %c0_i32_0 = arith.constant 0 : i32
    %c0_i32_1 = arith.constant 0 : i32
    return %c0_i32, %c0_i32_0 : i32, i32
  }
  func.func @transform_3(%arg0: i32) -> (i32, i32, i32) {
    %c0_i32 = arith.constant 0 : i32
    %c0_i32_0 = arith.constant 0 : i32
    %c0_i32_1 = arith.constant 0 : i32
    return %arg0, %c0_i32, %c0_i32_0 : i32, i32, i32
  }
}

</mosaic_0001>

<llo_original>
// kernel: tpu_custom_call.1
$region0: #{tpu_custom_call.1}
  #allocation0 [shape = 'u32[]', space=smem, size = 0x4, offset = 0x4, fixed_abs, tag = 'smem constant byte address 0x4 - core index']
  #allocation1 [shape = 'u32[72,128]{1,0:T(1,128)}', space=vmem, size = 0x9000, scoped, tag = 'internal scratch']
  #allocation2 [shape = 'bf16[64,144]{1,0:T(8,128)(2,1)}', space=vmem, size = 0x8000, scoped, tag = 'scratch operand']
  %s0 = inlined_call_operand.hbm [shape: bf16[2,16,82], index: 0, kind: input, shape index: {}]
  %s1 = inlined_call_operand.hbm [shape: bf16[32,64], index: 1, kind: input, shape index: {}]
  %s2 = inlined_call_operand.vmem [shape: f32[8,1], index: 2, kind: input, shape index: {}]
  %s3 = inlined_call_operand.hbm [shape: bf16[1,8,144], index: 3, kind: output, shape index: {}]
  %s4 = sld [smem:[#allocation0]]
  $region30: #{tpu_custom_call.1} parent=0
    _
  %s6 = ssub.s32 1, %s4
  %s7 = scalar_select 0, %s6, %s4
  $region1: #{tpu_custom_call.1} parent=0
    #allocation3 [shape = 'u8[8192]{0}', space=vmem, size = 0x2000, scoped, tag = 'input window, operand 0, single buffered']
    #allocation4 [shape = 's32[1]{0}', space=sflag, size = 0x4, scoped, tag = 'scoped memory for tpu_custom_call.1']
    #allocation5 [shape = 's32[1]{0}', space=sflag, size = 0x4, scoped, tag = 'scoped memory for tpu_custom_call.1']
    #allocation6 [shape = 'u8[8192]{0}', space=vmem, size = 0x2000, scoped, tag = 'input window, operand 1, single buffered']
    #allocation7 [shape = 's32[1]{0}', space=sflag, size = 0x4, scoped, tag = 'scoped memory for tpu_custom_call.1']
    #allocation8 [shape = 'u8[4096]{0}', space=vmem, size = 0x1000, scoped, tag = 'output window, operand 0, single buffered']
    %8 = vsyncpa [#allocation4], 0
    %9 = vsyncpa [#allocation7], 0
    %10 = vsyncpa [#allocation5], 0
    // Predicated region
    $region2: #{tpu_custom_call.1} parent=1 // pred_check
      _
    $region3: #{tpu_custom_call.1} parent=1 // pred_check_branch
      %12 = sbr.rel (0) target = $region5
    $region4: #{tpu_custom_call.1} parent=1 // pred_region
      %14 = vsyncadd [#allocation4], 0
      %s15 = sshll.u32 %s0, 4
      %s16 = int_to_ptr.hbm [resolvable:$true] %s15
      %s17 = sshll.u32 [#allocation3], 4
      %s18 = int_to_ptr.vmem [resolvable:$true] %s17
      %23 = dma.hbm_to_vmem [thread:$0]  %s16, 256, %s18, [#allocation4], 64, 64, 4
    $region5: #{tpu_custom_call.1} parent=1 // pred_fallthru
      _
    // Predicated region
    $region6: #{tpu_custom_call.1} parent=1 // pred_check
      _
    $region7: #{tpu_custom_call.1} parent=1 // pred_check_branch
      %25 = sbr.rel (0) target = $region9
    $region8: #{tpu_custom_call.1} parent=1 // pred_region
      %27 = vsyncadd [#allocation7], 0
      %s28 = sshll.u32 %s1, 4
      %s29 = int_to_ptr.hbm [resolvable:$true] %s28
      %s30 = sshll.u32 [#allocation6], 4
      %s31 = int_to_ptr.vmem [resolvable:$true] %s30
      %36 = dma.hbm_to_vmem [thread:$0]  %s29, 256, %s31, [#allocation7], 64, 64, 4
    $region9: #{tpu_custom_call.1} parent=1 // pred_fallthru
      _
    // Predicated region
    $region10: #{tpu_custom_call.1} parent=1 // pred_check
      _
    $region11: #{tpu_custom_call.1} parent=1 // pred_check_branch
      %38 = sbr.rel (0) target = $region13
    $region12: #{tpu_custom_call.1} parent=1 // pred_region
      _
    $region13: #{tpu_custom_call.1} parent=1 // pred_fallthru
      _
    // Predicated region
    $region14: #{tpu_custom_call.1} parent=1 // pred_check
      _
    $region15: #{tpu_custom_call.1} parent=1 // pred_check_branch
      %40 = sbr.rel (0) target = $region17
    $region16: #{tpu_custom_call.1} parent=1 // pred_region
      %42 = dma.done [#allocation4], 256
    $region17: #{tpu_custom_call.1} parent=1 // pred_fallthru
      _
    // Predicated region
    $region18: #{tpu_custom_call.1} parent=1 // pred_check
      _
    $region19: #{tpu_custom_call.1} parent=1 // pred_check_branch
      %44 = sbr.rel (0) target = $region21
    $region20: #{tpu_custom_call.1} parent=1 // pred_region
      %46 = dma.done [#allocation7], 256
    $region21: #{tpu_custom_call.1} parent=1 // pred_fallthru
      _
    %v48 = vld [vmem:[#allocation3] sm:$0xf]
    %v49 = vld [vmem:[#allocation3 + $0x4] sm:$0xf]
    %v52 = vunpack.c.l.b16 %v48
    %v53 = vunpack.c.l.b16 %v49
    %v54 = vpack.c.b16 %v53, %v52
    %55 = vrot.lane.b32.xlu0 %v54, 127
    %v56 = vpop.permute.xlu0 %55
    %57 = vrot.lane.b32.xlu0 %v54, 119
    %v58 = vpop.permute.xlu0 %57
    %59 = vrot.lane.b32.xlu0 %v54, 118
    %v60 = vpop.permute.xlu0 %59
    %v61 = vunpack.c.l.b16 %v56
    %v62 = vunpack.c.h.b16 %v56
    %v63 = vunpack.c.l.b16 %v58
    %v64 = vunpack.c.h.b16 %v58
    %v65 = vunpack.c.l.b16 %v60
    %v66 = vunpack.c.h.b16 %v60
    %v67 = vpack.c.b16 %v52, %v52
    %v68 = vpack.c.b16 %v53, %v53
    %v69 = vpack.c.b16 %v61, %v61
    %v70 = vpack.c.b16 %v62, %v62
    %v71 = vpack.c.b16 %v63, %v63
    %v72 = vpack.c.b16 %v64, %v64
    %v73 = vpack.c.b16 %v65, %v65
    %v74 = vpack.c.b16 %v66, %v66
    %vm83 = vcmask 584704
    %84 = vst.msk [vmem:[#allocation2] sm:$0xf] %vm83, %v67
    %85 = vst.msk [vmem:[#allocation2 + $0x8] sm:$0xf] %vm83, %v68
    %86 = vst.msk [vmem:[#allocation2 + $0x10] sm:$0xf] %vm83, %v69
    %87 = vst.msk [vmem:[#allocation2 + $0x18] sm:$0xf] %vm83, %v70
    %88 = vst.msk [vmem:[#allocation2 + $0x20] sm:$0xf] %vm83, %v71
    %89 = vst.msk [vmem:[#allocation2 + $0x28] sm:$0xf] %vm83, %v72
    %90 = vst.msk [vmem:[#allocation2 + $0x30] sm:$0xf] %vm83, %v73
    %91 = vst.msk [vmem:[#allocation2 + $0x38] sm:$0xf] %vm83, %v74
    %s92 = scalar_lea.vmem [#allocation3], 8
    %v93 = vld [vmem:[%s92] sm:$0xf]
    %v94 = vld [vmem:[%s92 + $0x4] sm:$0xf]
    %v97 = vunpack.c.l.b16 %v93
    %v98 = vunpack.c.l.b16 %v94
    %v99 = vpack.c.b16 %v98, %v97
    %100 = vrot.lane.b32.xlu0 %v99, 127
    %v101 = vpop.permute.xlu0 %100
    %102 = vrot.lane.b32.xlu0 %v99, 119
    %v103 = vpop.permute.xlu0 %102
    %104 = vrot.lane.b32.xlu0 %v99, 118
    %v105 = vpop.permute.xlu0 %104
    %v106 = vunpack.c.l.b16 %v101
    %v107 = vunpack.c.h.b16 %v101
    %v108 = vunpack.c.l.b16 %v103
    %v109 = vunpack.c.h.b16 %v103
    %v110 = vunpack.c.l.b16 %v105
    %v111 = vunpack.c.h.b16 %v105
    %v112 = vpack.c.b16 %v97, %v97
    %v113 = vpack.c.b16 %v98, %v98
    %v114 = vpack.c.b16 %v106, %v106
    %v115 = vpack.c.b16 %v107, %v107
    %v116 = vpack.c.b16 %v108, %v108
    %v117 = vpack.c.b16 %v109, %v109
    %v118 = vpack.c.b16 %v110, %v110
    %v119 = vpack.c.b16 %v111, %v111
    %120 = vrot.lane.b32.xlu0 %v112, 72
    %v121 = vpop.permute.xlu0 %120
    %122 = vrot.lane.b32.xlu0 %v113, 72
    %v123 = vpop.permute.xlu0 %122
    %124 = vrot.lane.b32.xlu0 %v114, 72
    %v125 = vpop.permute.xlu0 %124
    %126 = vrot.lane.b32.xlu0 %v115, 72
    %v127 = vpop.permute.xlu0 %126
    %128 = vrot.lane.b32.xlu0 %v116, 72
    %v129 = vpop.permute.xlu0 %128
    %130 = vrot.lane.b32.xlu0 %v117, 72
    %v131 = vpop.permute.xlu0 %130
    %132 = vrot.lane.b32.xlu0 %v118, 72
    %v133 = vpop.permute.xlu0 %132
    %134 = vrot.lane.b32.xlu0 %v119, 72
    %v135 = vpop.permute.xlu0 %134
    %v136 = vrot.slane %v121, 4
    %v137 = vrot.slane %v123, 4
    %v138 = vrot.slane %v125, 4
    %v139 = vrot.slane %v127, 4
    %v140 = vrot.slane %v129, 4
    %v141 = vrot.slane %v131, 4
    %v142 = vrot.slane %v133, 4
    %v143 = vrot.slane %v135, 4
    %vm144 = vcmask 588800
    %v145 = vsel %vm144, %v136, %v121
    %v146 = vsel %vm144, %v137, %v123
    %v147 = vsel %vm144, %v138, %v125
    %v148 = vsel %vm144, %v139, %v127
    %v149 = vsel %vm144, %v140, %v129
    %v150 = vsel %vm144, %v141, %v131
    %v151 = vsel %vm144, %v142, %v133
    %v152 = vsel %vm144, %v143, %v135
    %vm161 = vcmask 1044032
    %vm162 = vcmask 130052
    %vm163 = vmor %vm162, %vm161
    %164 = vst.msk [vmem:[#allocation2] sm:$0xff] %vm163, %v145
    %165 = vst.msk [vmem:[#allocation2 + $0x8] sm:$0xff] %vm163, %v146
    %166 = vst.msk [vmem:[#allocation2 + $0x10] sm:$0xff] %vm163, %v147
    %167 = vst.msk [vmem:[#allocation2 + $0x18] sm:$0xff] %vm163, %v148
    %168 = vst.msk [vmem:[#allocation2 + $0x20] sm:$0xff] %vm163, %v149
    %169 = vst.msk [vmem:[#allocation2 + $0x28] sm:$0xff] %vm163, %v150
    %170 = vst.msk [vmem:[#allocation2 + $0x30] sm:$0xff] %vm163, %v151
    %171 = vst.msk [vmem:[#allocation2 + $0x38] sm:$0xff] %vm163, %v152
    %v172 = vld [vmem:[#allocation6] sm:$0xf]
    %v173 = vld [vmem:[#allocation6 + $0x4] sm:$0xf]
    %v174 = vld [vmem:[#allocation6 + $0x8] sm:$0xf]
    %v175 = vld [vmem:[#allocation6 + $0xc] sm:$0xf]
    %v176 = vld [vmem:[#allocation2] sm:$0xff]
    %v177 = vld [vmem:[#allocation2 + $0x8] sm:$0xff]
    %v178 = vld [vmem:[#allocation2 + $0x10] sm:$0xff]
    %v179 = vld [vmem:[#allocation2 + $0x18] sm:$0xff]
    %v180 = vld [vmem:[#allocation2 + $0x20] sm:$0xff]
    %v181 = vld [vmem:[#allocation2 + $0x28] sm:$0xff]
    %v182 = vld [vmem:[#allocation2 + $0x30] sm:$0xff]
    %v183 = vld [vmem:[#allocation2 + $0x38] sm:$0xff]
    %v188 = vunpack.c.l.b16 %v172
    %v189 = vunpack.c.l.b16 %v173
    %v190 = vunpack.c.l.b16 %v174
    %v191 = vunpack.c.l.b16 %v175
    %v192 = vpack.c.b16 %v189, %v188
    %v193 = vpack.c.b16 %v191, %v190
    %v202 = vunpack.c.l.b16 %v176
    %v203 = vunpack.c.h.b16 %v176
    %v204 = vunpack.c.l.b16 %v177
    %v205 = vunpack.c.h.b16 %v177
    %v206 = vunpack.c.l.b16 %v178
    %v207 = vunpack.c.h.b16 %v178
    %v208 = vunpack.c.l.b16 %v179
    %v209 = vunpack.c.h.b16 %v179
    %v210 = vunpack.c.l.b16 %v180
    %v211 = vunpack.c.h.b16 %v180
    %v212 = vunpack.c.l.b16 %v181
    %v213 = vunpack.c.h.b16 %v181
    %v214 = vunpack.c.l.b16 %v182
    %v215 = vunpack.c.h.b16 %v182
    %v216 = vunpack.c.l.b16 %v183
    %v217 = vunpack.c.h.b16 %v183
    %v218 = vpack.c.b16 %v204, %v202
    %v219 = vpack.c.b16 %v205, %v203
    %v220 = vpack.c.b16 %v208, %v206
    %v221 = vpack.c.b16 %v209, %v207
    %v222 = vpack.c.b16 %v212, %v210
    %v223 = vpack.c.b16 %v213, %v211
    %v224 = vpack.c.b16 %v216, %v214
    %v225 = vpack.c.b16 %v217, %v215
    %vm234 = vcmask 523264
    %v236 = vsel %vm234, %v192, 0
    %v239 = vsel %vm234, %v193, 0
    %241 = vmatpush.bf16.msra.mxu0 0
    %242 = vmatpush.bf16.msra.mxu0 0
    %243 = vmatpush.bf16.msra.mxu0 0
    %244 = vmatpush.bf16.msra.mxu0 0
    %245 = vmatpush.bf16.msra.mxu0 %v224
    %246 = vmatpush.bf16.msra.mxu0 %v222
    %247 = vmatpush.bf16.msra.mxu0 %v220
    %248 = vmatpush.bf16.msra.mxu0 %v218
    %249 = vmatmul.bf16.gmra.mxu0 %v236
    %v250 = vpop.f32.mrf.mxu0
    %v251 = vadd.f32 0.0, %v250
    %v252 = vpop.f32.mrf.mxu0
    %v253 = vadd.f32 0.0, %v252
    %254 = vmatmul.bf16.gmra.mxu0 %v239
    %v255 = vpop.f32.mrf.mxu0
    %v256 = vadd.f32 0.0, %v255
    %v257 = vpop.f32.mrf.mxu0
    %v258 = vadd.f32 0.0, %v257
    %259 = vdwg.mxu0
    %260 = vmatpush.bf16.msra.mxu0 0
    %261 = vmatpush.bf16.msra.mxu0 0
    %262 = vmatpush.bf16.msra.mxu0 0
    %263 = vmatpush.bf16.msra.mxu0 0
    %264 = vmatpush.bf16.msra.mxu0 %v225
    %265 = vmatpush.bf16.msra.mxu0 %v223
    %266 = vmatpush.bf16.msra.mxu0 %v221
    %267 = vmatpush.bf16.msra.mxu0 %v219
    %268 = vmatmul.bf16.gmra.mxu0 %v236
    %v269 = vpop.f32.mrf.mxu0
    %v270 = vadd.f32 0.0, %v269
    %v271 = vpop.f32.mrf.mxu0
    %v272 = vadd.f32 0.0, %v271
    %273 = vmatmul.bf16.gmra.mxu0 %v239
    %v274 = vpop.f32.mrf.mxu0
    %v275 = vadd.f32 0.0, %v274
    %v276 = vpop.f32.mrf.mxu0
    %v277 = vadd.f32 0.0, %v276
    %278 = vdwg.mxu0
    %v279 = vmax.f32 %v251, %v256
    %v280 = vmax.f32 %v253, %v258
    %v281 = vmax.f32 %v279, %v280
    %vm282 = vcmask 130048
    %v283 = vsel %vm282, %v270, -inf
    %v284 = vsel %vm282, %v272, -inf
    %v285 = vsel %vm282, %v275, -inf
    %v286 = vmax.f32 %v283, %v285
    %v287 = vsel %vm282, %v277, -inf
    %v288 = vmax.f32 %v284, %v287
    %v289 = vmax.f32 %v286, %v288
    %v290 = vld [vmem:[%s2] sm:$0xff]
    %292 = vset.pattern.permute.xlu0 0
    %293 = vperm.xlu0 %292, %v290
    %v294 = vpop.permute.xlu0 %293
    %v296 = vadd.f32 %v281, %v294
    %v297 = vadd.f32 %v289, %v294
    %v298 = vmax.f32 %v296, 0.0
    %v299 = vmax.f32 %v297, 0.0
    %v300 = vpack.c.bf16 %v299, %v298
    %vm301 = vcmask 1043456
    %vm302 = vmor %vm162, %vm301
    %303 = vst.msk [vmem:[#allocation8] sm:$0xff] %vm302, %v300
    // Predicated region
    $region22: #{tpu_custom_call.1} parent=1 // pred_check
      _
    $region23: #{tpu_custom_call.1} parent=1 // pred_check_branch
      %305 = sbr.rel (0) target = $region25
    $region24: #{tpu_custom_call.1} parent=1 // pred_region
      %307 = vsyncadd [#allocation5], 0
      %s309 = sshll.u32 [#allocation8], 4
      %s310 = int_to_ptr.vmem [resolvable:$true] %s309
      %s311 = sshll.u32 %s3, 4
      %s312 = int_to_ptr.hbm [resolvable:$true] %s311
      %314 = dma.vmem_to_hbm [thread:$0]  %s310, 128, %s312, [#allocation5]
    $region25: #{tpu_custom_call.1} parent=1 // pred_fallthru
      _
    // Predicated region
    $region26: #{tpu_custom_call.1} parent=1 // pred_check
      _
    $region27: #{tpu_custom_call.1} parent=1 // pred_check_branch
      %316 = sbr.rel (0) target = $region29
    $region28: #{tpu_custom_call.1} parent=1 // pred_region
      %318 = dma.done [#allocation5], 128
    $region29: #{tpu_custom_call.1} parent=1 // pred_fallthru
      _
    %319 = vsyncpa [#allocation4], 1
    %320 = vsyncpa [#allocation7], 1
    %321 = vsyncpa [#allocation5], 1

</llo_original>
